<compile_context>
chip_gen: v7x
topology: tpu7x:2x2x1
jax: 0.10.0
libtpu: 0.0.40
codegen_flags: <defaults>
</compile_context>

<pallas_src>
import jax
import jax.numpy as jnp
from jax.experimental import pallas as pl
from jax.experimental.pallas import tpu as pltpu

LANES = 128
SUBLANES = 8


def _round_up(a, b):
    return (a + b - 1) // b * b


def _tpu_info():
    """(num_tensorcores_to_split_over, vmem_capacity_bytes) with safe fallbacks."""
    vmem_cap = 64 * (1 << 20)
    try:
        vmem_cap = int(pltpu.get_tpu_info().vmem_capacity_bytes)
    except Exception:
        pass
    num_cores = 1
    try:
        kind = jax.devices()[0].device_kind.lower()
    except Exception:
        kind = ""
    if "v7" in kind:  # v7x: two TensorCores per chip -> split the reduction
        num_cores = 2
    return num_cores, vmem_cap


def _make_kernel(row_block, inner, total_rows, needs_mask):
    n_tiles = row_block // SUBLANES

    def kernel(x_ref, y_ref, o_ref, acc_ref):
        c = pl.program_id(0)
        i = pl.program_id(1)

        # Reset the per-core (8,128) accumulator at the start of each sweep.
        @pl.when(i == 0)
        def _():
            acc_ref[...] = jnp.zeros_like(acc_ref)

        # Stream native dtype from HBM; widen in-register to f32.
        z = x_ref[...].astype(jnp.float32) - y_ref[...].astype(jnp.float32)
        az = jnp.abs(z)
        # Branchless smooth-L1 term, m = min(|z|, 0.01):
        #   |z| <  0.01 -> 0.5*z^2
        #   |z| >= 0.01 -> 0.01*(|z| - 0.005)
        m = jnp.minimum(az, 0.01)
        term = 0.5 * (m * m) + 0.01 * (az - m)

        def accumulate(t):
            # Fold (row_block,128) down to one (8,128) tile (pure VPU vreg adds,
            # reshape matches the native (8,128) tiling) and accumulate once.
            acc_ref[...] += t.reshape(n_tiles, SUBLANES, LANES).sum(axis=0)

        if needs_mask:
            row0 = (c * inner + i) * row_block
            is_partial = row0 + row_block > total_rows

            # Only the tail block / clamped duplicate block pays the mask.
            @pl.when(is_partial)
            def _():
                rids = row0 + jax.lax.broadcasted_iota(
                    jnp.int32, (row_block, LANES), 0)
                accumulate(jnp.where(rids < total_rows, term, 0.0))

            @pl.when(jnp.logical_not(is_partial))
            def _():
                accumulate(term)
        else:
            accumulate(term)

        # One deferred writeback per core; final reduce happens in the wrapper.
        @pl.when(i == pl.num_programs(1) - 1)
        def _():
            o_ref[0] = acc_ref[...]

    return kernel


def smooth_l1_loss(x, y):
    assert x.shape == y.shape
    n_total = int(x.size)

    xf = jnp.ravel(x)
    yf = jnp.ravel(y)

    # Lane-aligned prefix goes through the kernel; any ragged remainder
    # (< 128 elems, or a tiny input) is summed by plain XLA in the wrapper.
    # This avoids materializing a zero-padded copy of both inputs.
    n_main = (n_total // LANES) * LANES
    rows = n_main // LANES
    if rows < SUBLANES:
        n_main, rows = 0, 0

    tail_sum = jnp.float32(0.0)
    if n_main != n_total:
        zt = xf[n_main:].astype(jnp.float32) - yf[n_main:].astype(jnp.float32)
        azt = jnp.abs(zt)
        mt = jnp.minimum(azt, 0.01)
        tail_sum = jnp.sum(0.5 * mt * mt + 0.01 * (azt - mt))

    if rows == 0:
        return tail_sum / jnp.float32(n_total)

    if n_main == n_total:
        x2d = xf.reshape(rows, LANES)           # zero-copy
        y2d = yf.reshape(rows, LANES)
    else:
        x2d = xf[:n_main].reshape(rows, LANES)  # prefix slice only if misaligned
        y2d = yf[:n_main].reshape(rows, LANES)

    num_cores, vmem_cap = _tpu_info()

    # Big streaming tiles: 8192 rows (4 MiB f32/buffer) on 128-MiB-VMEM chips,
    # 4096 rows on v7x's 64 MiB. Cap so the block never exceeds the array rows.
    target_rows = 8192 if vmem_cap >= 100 * (1 << 20) else 4096
    row_block = min(target_rows,
                    _round_up(pl.cdiv(rows, num_cores), SUBLANES),
                    (rows // SUBLANES) * SUBLANES)
    num_blocks = pl.cdiv(rows, row_block)
    inner = pl.cdiv(num_blocks, num_cores)
    overshoot = num_cores * inner > num_blocks          # duplicated clamped block?
    needs_mask = num_cores * inner * row_block != rows  # any garbage rows?

    def in_map(c, i):
        blk = c * inner + i
        if overshoot:
            # Clamp so the DMA never walks past the array; the duplicate
            # block's contribution is zeroed by the in-kernel row mask.
            blk = jnp.minimum(blk, num_blocks - 1)
        return (blk, 0)

    kernel = _make_kernel(row_block, inner, rows, needs_mask)

    itemsize = x2d.dtype.itemsize
    block_elems = row_block * LANES
    vmem_limit = int(2 * 2 * block_elems * itemsize   # 2 inputs x double buffer
                     + 6 * block_elems * 4            # f32 temporaries headroom
                     + (2 << 20))
    vmem_limit = max(vmem_limit, 16 << 20)
    vmem_limit = min(vmem_limit, vmem_cap * 3 // 4)

    cost = pl.CostEstimate(
        flops=9 * n_main,
        transcendentals=0,
        bytes_accessed=2 * n_main * itemsize + num_cores * SUBLANES * LANES * 4,
    )

    partials = pl.pallas_call(
        kernel,
        out_shape=jax.ShapeDtypeStruct((num_cores, SUBLANES, LANES), jnp.float32),
        grid_spec=pltpu.PrefetchScalarGridSpec(
            num_scalar_prefetch=0,
            grid=(num_cores, inner),
            in_specs=[
                pl.BlockSpec((row_block, LANES), in_map),
                pl.BlockSpec((row_block, LANES), in_map),
            ],
            out_specs=pl.BlockSpec((1, SUBLANES, LANES), lambda c, i: (c, 0, 0)),
            scratch_shapes=[pltpu.VMEM((SUBLANES, LANES), jnp.float32)],
        ),
        compiler_params=pltpu.CompilerParams(
            # TODO(synk): on v7x, verify via xprof that both TCs engage; if one
            # is idle, switch the leading axis to pltpu.CORE_PARALLEL.
            dimension_semantics=(pltpu.PARALLEL, pltpu.ARBITRARY),
            vmem_limit_bytes=int(vmem_limit),
        ),
        cost_estimate=cost,
    )(x2d, y2d)

    return (jnp.sum(partials) + tail_sum) / jnp.float32(n_total)


def _reference(x, y):
    # Mirrors the PyTorch module's masked-mean algebra exactly.
    z = (x - y).astype(jnp.float32)
    az = jnp.abs(z)
    mse_mask = (az < 0.01).astype(jnp.float32)
    l1_mask = (az >= 0.01).astype(jnp.float32)
    mse = mse_mask * z
    l1 = l1_mask * z
    return (jnp.mean(0.5 * mse * mse * mse_mask)
            + jnp.mean(0.01 * (jnp.abs(l1) - 0.005) * l1_mask))


if __name__ == "__main__":
    key = jax.random.PRNGKey(0)
    kx, ky = jax.random.split(key)
    # NCHW-shaped inputs; scaled so residuals straddle the 0.01 threshold.
    x = jax.random.normal(kx, (2, 4, 16, 16), dtype=jnp.float32) * 0.02
    y = jax.random.normal(ky, (2, 4, 16, 16), dtype=jnp.float32) * 0.02

    loss = jax.block_until_ready(smooth_l1_loss(x, y))
    ref = jax.block_until_ready(_reference(x, y))

    assert jnp.allclose(loss, ref, rtol=1e-5, atol=1e-7), (loss, ref)
    print("KERNEL_OK")
</pallas_src>

<mosaic_0001>
module attributes {stable_mosaic.version = 11 : i64} {
  func.func @kernel(%arg0: i32, %arg1: i32, %arg2: memref<16x128xf32, #tpu.memory_space<vmem>>, %arg3: memref<16x128xf32, #tpu.memory_space<vmem>>, %arg4: memref<1x8x128xf32, #tpu.memory_space<vmem>>, %arg5: memref<8x128xf32, #tpu.memory_space<vmem>>) attributes {dimension_semantics = [#tpu.dimension_semantics<parallel>, #tpu.dimension_semantics<arbitrary>], iteration_bounds = array<i64: 1, 1>, scalar_prefetch = 0 : i64, scratch_operands = 1 : i64, tpu.core_type = #tpu.core_type<tc>, window_params = [{transform_indices = @transform_0, window_bounds = array<i64: 16, 128>}, {transform_indices = @transform_1, window_bounds = array<i64: 16, 128>}, {transform_indices = @transform_2, window_bounds = array<i64: 1, 8, 128>}]} {
    %c0_i32 = arith.constant 0 : i32
    %0 = arith.cmpi eq, %arg1, %c0_i32 : i32
    %1 = arith.extui %0 : i1 to i32
    %c0_i32_0 = arith.constant 0 : i32
    %2 = arith.cmpi ne, %1, %c0_i32_0 : i32
    scf.if %2 {
      %cst_13 = arith.constant 0.000000e+00 : f32
      %24 = vector.broadcast %cst_13 : f32 to vector<8x128xf32>
      %c0_14 = arith.constant 0 : index
      %c0_15 = arith.constant 0 : index
      %25 = vector.load %arg5[%c0_14, %c0_15] : memref<8x128xf32, #tpu.memory_space<vmem>>, vector<8x128xf32>
      tpu.vector_store %arg5[%c0_14, %c0_15], %24 {strides = array<i32>} : memref<8x128xf32, #tpu.memory_space<vmem>>, vector<8x128xf32>,
    } else {
    }
    %c0 = arith.constant 0 : index
    %c0_1 = arith.constant 0 : index
    %3 = vector.load %arg2[%c0, %c0_1] : memref<16x128xf32, #tpu.memory_space<vmem>>, vector<16x128xf32>
    %c0_2 = arith.constant 0 : index
    %c0_3 = arith.constant 0 : index
    %4 = vector.load %arg3[%c0_2, %c0_3] : memref<16x128xf32, #tpu.memory_space<vmem>>, vector<16x128xf32>
    %5 = arith.subf %3, %4 : vector<16x128xf32>
    %6 = math.absf %5 : vector<16x128xf32>
    %cst = arith.constant 0.00999999977 : f32
    %7 = vector.broadcast %cst : f32 to vector<16x128xf32>
    %8 = arith.minimumf %6, %7 : vector<16x128xf32>
    %9 = arith.mulf %8, %8 : vector<16x128xf32>
    %cst_4 = arith.constant 5.000000e-01 : f32
    %10 = vector.broadcast %cst_4 : f32 to vector<16x128xf32>
    %11 = arith.mulf %10, %9 : vector<16x128xf32>
    %12 = arith.subf %6, %8 : vector<16x128xf32>
    %cst_5 = arith.constant 0.00999999977 : f32
    %13 = vector.broadcast %cst_5 : f32 to vector<16x128xf32>
    %14 = arith.mulf %13, %12 : vector<16x128xf32>
    %15 = arith.addf %11, %14 : vector<16x128xf32>
    %c0_6 = arith.constant 0 : index
    %c0_7 = arith.constant 0 : index
    %16 = vector.load %arg5[%c0_6, %c0_7] : memref<8x128xf32, #tpu.memory_space<vmem>>, vector<8x128xf32>
    %17 = vector.shape_cast %15 : vector<16x128xf32> to vector<2x8x128xf32>
    %cst_8 = arith.constant dense<0.000000e+00> : vector<8x128xf32>
    %18 = vector.multi_reduction <add>, %17, %cst_8 [0] : vector<2x8x128xf32> to vector<8x128xf32>
    %19 = arith.addf %16, %18 : vector<8x128xf32>
    %c0_9 = arith.constant 0 : index
    %c0_10 = arith.constant 0 : index
    %20 = vector.load %arg5[%c0_9, %c0_10] : memref<8x128xf32, #tpu.memory_space<vmem>>, vector<8x128xf32>
    tpu.vector_store %arg5[%c0_9, %c0_10], %19 {strides = array<i32>} : memref<8x128xf32, #tpu.memory_space<vmem>>, vector<8x128xf32>,
    %c0_i32_11 = arith.constant 0 : i32
    %21 = arith.cmpi eq, %arg1, %c0_i32_11 : i32
    %22 = arith.extui %21 : i1 to i32
    %c0_i32_12 = arith.constant 0 : i32
    %23 = arith.cmpi ne, %22, %c0_i32_12 : i32
    scf.if %23 {
      %c0_13 = arith.constant 0 : index
      %c0_14 = arith.constant 0 : index
      %24 = vector.load %arg5[%c0_13, %c0_14] : memref<8x128xf32, #tpu.memory_space<vmem>>, vector<8x128xf32>
      %c0_15 = arith.constant 0 : index
      %c0_16 = arith.constant 0 : index
      %c0_17 = arith.constant 0 : index
      %25 = vector.load %arg4[%c0_15, %c0_16, %c0_17] : memref<1x8x128xf32, #tpu.memory_space<vmem>>, vector<1x8x128xf32>
      %26 = vector.shape_cast %25 : vector<1x8x128xf32> to vector<8x128xf32>
      %27 = vector.shape_cast %24 : vector<8x128xf32> to vector<1x8x128xf32>
      tpu.vector_store %arg4[%c0_15, %c0_16, %c0_17], %27 {strides = array<i32>} : memref<1x8x128xf32, #tpu.memory_space<vmem>>, vector<1x8x128xf32>,
    } else {
    }
    return
  }
  func.func @transform_0(%arg0: i32, %arg1: i32) -> (i32, i32) {
    %c1_i32 = arith.constant 1 : i32
    %0 = arith.muli %arg0, %c1_i32 : i32
    %1 = arith.addi %0, %arg1 : i32
    %c0_i32 = arith.constant 0 : i32
    %c0_i32_0 = arith.constant 0 : i32
    return %1, %c0_i32 : i32, i32
  }
  func.func @transform_1(%arg0: i32, %arg1: i32) -> (i32, i32) {
    %c1_i32 = arith.constant 1 : i32
    %0 = arith.muli %arg0, %c1_i32 : i32
    %1 = arith.addi %0, %arg1 : i32
    %c0_i32 = arith.constant 0 : i32
    %c0_i32_0 = arith.constant 0 : i32
    return %1, %c0_i32 : i32, i32
  }
  func.func @transform_2(%arg0: i32, %arg1: i32) -> (i32, i32, i32) {
    %c0_i32 = arith.constant 0 : i32
    %c0_i32_0 = arith.constant 0 : i32
    %c0_i32_1 = arith.constant 0 : i32
    return %arg0, %c0_i32, %c0_i32_0 : i32, i32, i32
  }
}

</mosaic_0001>

<llo_original>
// kernel: tpu_custom_call.1
$region0: #{tpu_custom_call.1}
  #allocation0 [shape = 'u32[]', space=smem, size = 0x4, offset = 0x4, fixed_abs, tag = 'smem constant byte address 0x4 - core index']
  #allocation1 [shape = 'u32[144,128]{1,0:T(1,128)}', space=vmem, size = 0x12000, scoped, tag = 'internal scratch']
  #allocation2 [shape = 'f32[8,128]{1,0:T(8,128)}', space=vmem, size = 0x1000, scoped, tag = 'scratch operand']
  %s0 = inlined_call_operand.hbm [shape: f32[16,128], index: 0, kind: input, shape index: {}]
  %s1 = inlined_call_operand.hbm [shape: f32[16,128], index: 1, kind: input, shape index: {}]
  %s2 = inlined_call_operand.hbm [shape: f32[1,8,128], index: 2, kind: output, shape index: {}]
  %s3 = sld [smem:[#allocation0]]
  $region34: #{tpu_custom_call.1} parent=0
    _
  %s5 = ssub.s32 1, %s3
  %s6 = scalar_select 0, %s5, %s3
  $region1: #{tpu_custom_call.1} parent=0
    #allocation3 [shape = 'u8[8192]{0}', space=vmem, size = 0x2000, scoped, tag = 'input window, operand 0, single buffered']
    #allocation4 [shape = 's32[1]{0}', space=sflag, size = 0x4, scoped, tag = 'scoped memory for tpu_custom_call.1']
    #allocation5 [shape = 's32[1]{0}', space=sflag, size = 0x4, scoped, tag = 'scoped memory for tpu_custom_call.1']
    #allocation6 [shape = 'u8[8192]{0}', space=vmem, size = 0x2000, scoped, tag = 'input window, operand 1, single buffered']
    #allocation7 [shape = 's32[1]{0}', space=sflag, size = 0x4, scoped, tag = 'scoped memory for tpu_custom_call.1']
    #allocation8 [shape = 'u8[4096]{0}', space=vmem, size = 0x1000, scoped, tag = 'output window, operand 0, single buffered']
    %7 = vsyncpa [#allocation4], 0
    %8 = vsyncpa [#allocation7], 0
    %9 = vsyncpa [#allocation5], 0
    // Predicated region
    $region2: #{tpu_custom_call.1} parent=1 // pred_check
      _
    $region3: #{tpu_custom_call.1} parent=1 // pred_check_branch
      %11 = sbr.rel (0) target = $region5
    $region4: #{tpu_custom_call.1} parent=1 // pred_region
      %s12 = sadd.s32 0, 0
      %s13 = smul.u32 2, %s12
      %s15 = ssub.s32 256, 256
      %16 = vsyncadd [#allocation4], %s15
      %s17 = smul.addr %s13, 128
      %s18 = scalar_lea.hbm %s0, %s17
      %s19 = sshll.u32 [#allocation3], 4
      %s20 = int_to_ptr.vmem [resolvable:$true] %s19
      %25 = dma.hbm_to_vmem [thread:$0]  %s18, 256, %s20, [#allocation4], 128, 128, 8
    $region5: #{tpu_custom_call.1} parent=1 // pred_fallthru
      _
    // Predicated region
    $region6: #{tpu_custom_call.1} parent=1 // pred_check
      _
    $region7: #{tpu_custom_call.1} parent=1 // pred_check_branch
      %27 = sbr.rel (0) target = $region9
    $region8: #{tpu_custom_call.1} parent=1 // pred_region
      %s28 = sadd.s32 0, 0
      %s29 = smul.u32 2, %s28
      %s31 = ssub.s32 256, 256
      %32 = vsyncadd [#allocation7], %s31
      %s33 = smul.addr %s29, 128
      %s34 = scalar_lea.hbm %s1, %s33
      %s35 = sshll.u32 [#allocation6], 4
      %s36 = int_to_ptr.vmem [resolvable:$true] %s35
      %41 = dma.hbm_to_vmem [thread:$0]  %s34, 256, %s36, [#allocation7], 128, 128, 8
    $region9: #{tpu_custom_call.1} parent=1 // pred_fallthru
      _
    // Predicated region
    $region10: #{tpu_custom_call.1} parent=1 // pred_check
      _
    $region11: #{tpu_custom_call.1} parent=1 // pred_check_branch
      %43 = sbr.rel (0) target = $region13
    $region12: #{tpu_custom_call.1} parent=1 // pred_region
      %44 = dma.done [#allocation4], 256
    $region13: #{tpu_custom_call.1} parent=1 // pred_fallthru
      _
    // Predicated region
    $region14: #{tpu_custom_call.1} parent=1 // pred_check
      _
    $region15: #{tpu_custom_call.1} parent=1 // pred_check_branch
      %46 = sbr.rel (0) target = $region17
    $region16: #{tpu_custom_call.1} parent=1 // pred_region
      %47 = dma.done [#allocation7], 256
    $region17: #{tpu_custom_call.1} parent=1 // pred_fallthru
      _
    %s48 = sadd.s32 0, 0
    %s49 = smul.u32 2, %s48
    %s50 = sadd.s32 0, 0
    %s51 = smul.u32 2, %s50
    %p52 = scmp.eq.s32.totalorder 0, 0
    // Predicated region
    $region18: #{tpu_custom_call.1} parent=1 // pred_check
      %p53 = pneg %p52
    $region19: #{tpu_custom_call.1} parent=1 // pred_check_branch
      %55 = sbr.rel (%p53) target = $region21
    $region20: #{tpu_custom_call.1} parent=1 // pred_region
      %56 = vst [vmem:[#allocation2] sm:$0xff] 0.0
    $region21: #{tpu_custom_call.1} parent=1 // pred_fallthru
      _
    %v57 = vld [vmem:[#allocation3] sm:$0xff]
    %v58 = vld [vmem:[#allocation3 + $0x8] sm:$0xff]
    %v59 = vld [vmem:[#allocation6] sm:$0xff]
    %v60 = vld [vmem:[#allocation6 + $0x8] sm:$0xff]
    %v61 = vsub.f32 %v57, %v59
    %v62 = vsub.f32 %v58, %v60
    %v63 = vand.u32 2147483647, %v61
    %v64 = vand.u32 2147483647, %v62
    %v65 = vmin.f32 %v63, 0.01
    %v66 = vmin.f32 %v64, 0.01
    %v67 = vmul.f32 %v65, %v65
    %v68 = vmul.f32 %v66, %v66
    %v69 = vmul.f32 %v67, 0.5
    %v70 = vmul.f32 %v68, 0.5
    %v71 = vsub.f32 %v63, %v65
    %v72 = vsub.f32 %v64, %v66
    %v73 = vmul.f32 %v71, 0.01
    %v74 = vmul.f32 %v72, 0.01
    %v75 = vadd.f32 %v69, %v73
    %v76 = vadd.f32 %v70, %v74
    %v77 = vld [vmem:[#allocation2] sm:$0xff]
    %v78 = vadd.f32 %v75, %v76
    %v79 = vadd.f32 %v77, %v78
    %80 = vst [vmem:[#allocation2] sm:$0xff] %v79
    // Predicated region
    $region22: #{tpu_custom_call.1} parent=1 // pred_check
      %p81 = pneg %p52
    $region23: #{tpu_custom_call.1} parent=1 // pred_check_branch
      %83 = sbr.rel (%p81) target = $region25
    $region24: #{tpu_custom_call.1} parent=1 // pred_region
      %v84 = vld [vmem:[#allocation2] sm:$0xff]
      %85 = vst [vmem:[#allocation8] sm:$0xff] %v84
    $region25: #{tpu_custom_call.1} parent=1 // pred_fallthru
      _
    // Predicated region
    $region26: #{tpu_custom_call.1} parent=1 // pred_check
      _
    $region27: #{tpu_custom_call.1} parent=1 // pred_check_branch
      %87 = sbr.rel (0) target = $region29
    $region28: #{tpu_custom_call.1} parent=1 // pred_region
      %s89 = ssub.s32 128, 128
      %90 = vsyncadd [#allocation5], %s89
      %s92 = sshll.u32 [#allocation8], 4
      %s93 = int_to_ptr.vmem [resolvable:$true] %s92
      %95 = dma.vmem_to_hbm [thread:$0]  %s93, 128, %s2, [#allocation5]
    $region29: #{tpu_custom_call.1} parent=1 // pred_fallthru
      _
    // Predicated region
    $region30: #{tpu_custom_call.1} parent=1 // pred_check
      _
    $region31: #{tpu_custom_call.1} parent=1 // pred_check_branch
      %97 = sbr.rel (0) target = $region33
    $region32: #{tpu_custom_call.1} parent=1 // pred_region
      %98 = dma.done [#allocation5], 128
    $region33: #{tpu_custom_call.1} parent=1 // pred_fallthru
      _
    %99 = vsyncpa [#allocation4], 1
    %100 = vsyncpa [#allocation7], 1
    %101 = vsyncpa [#allocation5], 1

</llo_original>
